<compile_context>
chip_gen: v7x
topology: tpu7x:2x2x1
jax: 0.10.0
libtpu: 0.0.40
codegen_flags: <defaults>
</compile_context>

<pallas_src>
import math

import numpy as np

import jax
import jax.numpy as jnp
from jax.experimental import pallas as pl
from jax.experimental.pallas import tpu as pltpu


def _round_up(x, m):
    return ((x + m - 1) // m) * m


def _pve3d_kernel(pos_ref, tab_ref, out_ref):
    """One grid step: rows [i*TM, (i+1)*TM) of the (M, D) output.

    pos_ref : (3, TM)      x/y/z as sublane rows; TM (lane axis) mult. of 128
    tab_ref : (D_pad, 4)   per-output-column tables [fx, fy, fz, phase]
    out_ref : (TM, D)      natural-layout output block (contiguous HBM write)
    """
    x = pos_ref[0:1, :]            # (1, TM)   broadcast over sublanes (rows)
    y = pos_ref[1:2, :]
    z = pos_ref[2:3, :]

    fx = tab_ref[:, 0:1]           # (D_pad, 1) broadcast over lanes
    fy = tab_ref[:, 1:2]
    fz = tab_ref[:, 2:3]
    ph = tab_ref[:, 3:4]           # 0 for sin columns, pi/2 for cos columns

    # Lane-dense: 3 broadcast multiply-adds + one sin per output element.
    angles = fx * x + fy * y + fz * z + ph          # (D_pad, TM)
    vals_t = jnp.sin(angles)                        # fully lane-dense VPU work

    # Single in-kernel transpose (rides the otherwise-idle XLU) so the store
    # below is a natural-layout block and no XLA transpose is needed outside.
    vals = jnp.transpose(vals_t, (1, 0))            # (TM, D_pad)
    d = out_ref.shape[1]
    out_ref[...] = vals[:, :d].astype(out_ref.dtype)


def positional_velocity_embedding_3d(positions, embedding_dim, length_scale,
                                     *, tile_m=16384, out_dtype=jnp.float32):
    """Pallas implementation of PositionalVelocityEmbedding3D.forward."""
    assert embedding_dim % 6 == 0, "embedding_dim must be divisible by 6"
    B, N, C = positions.shape
    assert C == 3

    D = embedding_dim
    num_freqs = D // 6

    # Deterministic "parameter" buffer, same formula as the torch module.
    periods = length_scale * jnp.exp(jnp.linspace(-3.0, 1.0, num_freqs))
    freqs = (2.0 * math.pi / periods).astype(jnp.float32)          # (F,)

    # Per-output-column tables in the exact PyTorch column order:
    # column j -> k = j // 6, within = j % 6,
    # within: 0..2 -> sin(x/y/z), 3..5 -> cos(x/y/z) (= sin(. + pi/2)).
    # Rows are padded to a multiple of 8 (f32 sublane tile); padded rows are
    # all-zero -> sin(0) = 0 and are sliced off before the store.
    D_pad = _round_up(D, 8)
    col = jnp.arange(D)
    k = col // 6
    within = col % 6
    axis = within % 3
    freq_col = freqs[k]
    fx = jnp.where(axis == 0, freq_col, 0.0)
    fy = jnp.where(axis == 1, freq_col, 0.0)
    fz = jnp.where(axis == 2, freq_col, 0.0)
    phase = jnp.where(within >= 3, jnp.float32(math.pi / 2.0), jnp.float32(0.0))
    tables = jnp.stack([fx, fy, fz, phase], axis=1).astype(jnp.float32)  # (D,4)
    if D_pad != D:
        tables = jnp.pad(tables, ((0, D_pad - D), (0, 0)))

    # ---------------- tile sizing ----------------
    M = B * N
    out_isz = np.dtype(out_dtype).itemsize
    # Per-row VMEM bytes per grid step: double-buffered in/out blocks plus the
    # f32 intermediates (angles, sin result, transposed result).
    row_bytes = 2 * (3 * 4 + D * out_isz) + 3 * D_pad * 4
    vmem_budget = 40 * 1024 * 1024          # safe even under v7x's 64 MiB VMEM
    tile_cap = max(128, (vmem_budget // row_bytes) // 128 * 128)
    tm = min(tile_m, tile_cap)
    # >= 4 grid steps when M allows: 2 steps per v7x TensorCore keeps the
    # double-buffered pipeline alive on both cores.
    tm = min(tm, max(128, _round_up(pl.cdiv(M, 4), 128)))
    # Rebalance so the (masked) tail block wastes as little work as possible.
    steps = pl.cdiv(M, tm)
    tm = max(128, _round_up(pl.cdiv(M, steps), 128))
    grid = (pl.cdiv(M, tm),)

    # Lane-dense input layout: coordinates as 3 sublane rows, M on lanes.
    # (One tiny XLA pass over 12 B/position vs D*4 B/position of output.)
    pos_t = positions.astype(jnp.float32).reshape(M, 3).T          # (3, M)

    vmem_limit = int(min(max(tm * row_bytes + (8 << 20), 16 << 20), 48 << 20))

    out = pl.pallas_call(
        _pve3d_kernel,
        out_shape=jax.ShapeDtypeStruct((M, D), out_dtype),
        grid_spec=pltpu.PrefetchScalarGridSpec(
            num_scalar_prefetch=0,
            grid=grid,
            in_specs=[
                # (3, tm): full sublane extent, lane-dense tile of M.
                pl.BlockSpec((3, tm), lambda i: (0, i)),
                # Tiny constant table; same block every step -> fetched once.
                pl.BlockSpec((D_pad, 4), lambda i: (0, 0)),
            ],
            # Natural-layout output block: contiguous HBM write, no transpose
            # pass outside the kernel.  Ragged tails are masked edge blocks.
            out_specs=pl.BlockSpec((tm, D), lambda i: (i, 0)),
        ),
        compiler_params=pltpu.CompilerParams(
            dimension_semantics=("parallel",),
            vmem_limit_bytes=vmem_limit,
        ),
    )(pos_t, tables)

    # Reshape only (no transpose, no slice): metadata-level in XLA.
    return out.reshape(B, N, D)


def _reference(positions, embedding_dim, length_scale):
    """Pure-JAX transcription of the PyTorch forward (for verification)."""
    num_freqs = embedding_dim // 6
    periods = length_scale * jnp.exp(jnp.linspace(-3.0, 1.0, num_freqs))
    x = positions[:, :, 0:1]
    y = positions[:, :, 1:2]
    z = positions[:, :, 2:3]
    encodings = []
    for k in range(num_freqs):
        f = 2.0 * math.pi / periods[k]
        encodings.append(jnp.sin(f * x))
        encodings.append(jnp.sin(f * y))
        encodings.append(jnp.sin(f * z))
        encodings.append(jnp.cos(f * x))
        encodings.append(jnp.cos(f * y))
        encodings.append(jnp.cos(f * z))
    return jnp.concatenate(encodings, axis=-1)


if __name__ == "__main__":
    embedding_dim = 48        # -> num_freqs = 8, output dim = 48
    length_scale = 2.0
    B, N = 2, 128

    key = jax.random.PRNGKey(0)
    positions = jax.random.normal(key, (B, N, 3), dtype=jnp.float32)

    out = positional_velocity_embedding_3d(positions, embedding_dim,
                                           length_scale)
    out = jax.block_until_ready(out)

    ref = _reference(positions, embedding_dim, length_scale)
    assert out.shape == (B, N, embedding_dim), out.shape
    # cos is computed as sin(angle + pi/2); for large |angle| the f32 phase
    # add perturbs the argument by a few ulps, so allow 2e-4 abs.
    max_err = float(jnp.max(jnp.abs(out - ref)))
    assert max_err <= 2e-4, max_err

    print("KERNEL_OK")
</pallas_src>

<mosaic_0001>
module attributes {stable_mosaic.version = 11 : i64} {
  func.func @_pve3d_kernel(%arg0: i32, %arg1: memref<3x128xf32, #tpu.memory_space<vmem>>, %arg2: memref<48x4xf32, #tpu.memory_space<vmem>>, %arg3: memref<128x48xf32, #tpu.memory_space<vmem>>) attributes {dimension_semantics = [#tpu.dimension_semantics<parallel>], iteration_bounds = array<i64: 2>, scalar_prefetch = 0 : i64, scratch_operands = 0 : i64, tpu.core_type = #tpu.core_type<tc>, window_params = [{transform_indices = @transform_0, window_bounds = array<i64: 3, 128>}, {pipeline_mode = #tpu.pipeline_mode<synchronous>, transform_indices = @transform_1, window_bounds = array<i64: 48, 4>}, {transform_indices = @transform_2, window_bounds = array<i64: 128, 48>}]} {
    %c0 = arith.constant 0 : index
    %c0_0 = arith.constant 0 : index
    %0 = vector.load %arg1[%c0, %c0_0] : memref<3x128xf32, #tpu.memory_space<vmem>>, vector<1x128xf32>
    %c1 = arith.constant 1 : index
    %c0_1 = arith.constant 0 : index
    %1 = vector.load %arg1[%c1, %c0_1] : memref<3x128xf32, #tpu.memory_space<vmem>>, vector<1x128xf32>
    %c2 = arith.constant 2 : index
    %c0_2 = arith.constant 0 : index
    %2 = vector.load %arg1[%c2, %c0_2] : memref<3x128xf32, #tpu.memory_space<vmem>>, vector<1x128xf32>
    %c0_3 = arith.constant 0 : index
    %c0_4 = arith.constant 0 : index
    %3 = vector.load %arg2[%c0_3, %c0_4] : memref<48x4xf32, #tpu.memory_space<vmem>>, vector<48x1xf32>
    %c0_5 = arith.constant 0 : index
    %c1_6 = arith.constant 1 : index
    %4 = vector.load %arg2[%c0_5, %c1_6] : memref<48x4xf32, #tpu.memory_space<vmem>>, vector<48x1xf32>
    %c0_7 = arith.constant 0 : index
    %c2_8 = arith.constant 2 : index
    %5 = vector.load %arg2[%c0_7, %c2_8] : memref<48x4xf32, #tpu.memory_space<vmem>>, vector<48x1xf32>
    %c0_9 = arith.constant 0 : index
    %c3 = arith.constant 3 : index
    %6 = vector.load %arg2[%c0_9, %c3] : memref<48x4xf32, #tpu.memory_space<vmem>>, vector<48x1xf32>
    %7 = vector.broadcast %3 : vector<48x1xf32> to vector<48x128xf32>
    %8 = vector.broadcast %0 : vector<1x128xf32> to vector<48x128xf32>
    %9 = arith.mulf %7, %8 : vector<48x128xf32>
    %10 = vector.broadcast %4 : vector<48x1xf32> to vector<48x128xf32>
    %11 = vector.broadcast %1 : vector<1x128xf32> to vector<48x128xf32>
    %12 = arith.mulf %10, %11 : vector<48x128xf32>
    %13 = arith.addf %9, %12 : vector<48x128xf32>
    %14 = vector.broadcast %5 : vector<48x1xf32> to vector<48x128xf32>
    %15 = vector.broadcast %2 : vector<1x128xf32> to vector<48x128xf32>
    %16 = arith.mulf %14, %15 : vector<48x128xf32>
    %17 = arith.addf %13, %16 : vector<48x128xf32>
    %18 = vector.broadcast %6 : vector<48x1xf32> to vector<48x128xf32>
    %19 = arith.addf %17, %18 : vector<48x128xf32>
    %20 = math.sin %19 : vector<48x128xf32>
    %21 = tpu.transpose %20, [1, 0] : vector<48x128xf32> -> vector<128x48xf32>
    %c0_10 = arith.constant 0 : index
    %c0_11 = arith.constant 0 : index
    %22 = vector.load %arg3[%c0_10, %c0_11] : memref<128x48xf32, #tpu.memory_space<vmem>>, vector<128x48xf32>
    tpu.vector_store %arg3[%c0_10, %c0_11], %21 {strides = array<i32>} : memref<128x48xf32, #tpu.memory_space<vmem>>, vector<128x48xf32>,
    return
  }
  func.func @transform_0(%arg0: i32) -> (i32, i32) {
    %c0_i32 = arith.constant 0 : i32
    %c0_i32_0 = arith.constant 0 : i32
    return %c0_i32, %arg0 : i32, i32
  }
  func.func @transform_1(%arg0: i32) -> (i32, i32) {
    %c0_i32 = arith.constant 0 : i32
    %c0_i32_0 = arith.constant 0 : i32
    %c0_i32_1 = arith.constant 0 : i32
    return %c0_i32, %c0_i32_0 : i32, i32
  }
  func.func @transform_2(%arg0: i32) -> (i32, i32) {
    %c0_i32 = arith.constant 0 : i32
    %c0_i32_0 = arith.constant 0 : i32
    return %arg0, %c0_i32 : i32, i32
  }
}

</mosaic_0001>

<llo_original>
// kernel: tpu_custom_call.1
$region0: #{tpu_custom_call.1}
  #allocation0 [shape = 'u32[]', space=smem, size = 0x4, offset = 0x4, fixed_abs, tag = 'smem constant byte address 0x4 - core index']
  #allocation1 [shape = 'u32[144,128]{1,0:T(1,128)}', space=vmem, size = 0x12000, scoped, tag = 'internal scratch']
  %s0 = inlined_call_operand.vmem [shape: f32[3,256], index: 0, kind: input, shape index: {}]
  %s1 = inlined_call_operand.vmem [shape: f32[48,4], index: 1, kind: input, shape index: {}]
  %s2 = inlined_call_operand.vmem [shape: f32[256,48], index: 2, kind: output, shape index: {}]
  %s3 = sld [smem:[#allocation0]]
  $region41: #{tpu_custom_call.1} parent=0
    _
  %s5 = ssub.s32 1, %s3
  %s6 = scalar_select 0, %s5, %s3
  loop: start=0, step=1, limit=4
  $region2: #{tpu_custom_call.1} parent=0 // loop_pre_header
    _
  $region3: #{tpu_custom_call.1} parent=0 // loop_header
    %s8 = sphi 0, %s12
    %p9 = scmp.ge.s32.totalorder %s8, 4
    %s18 = sphi 0, %s20
    %s21 = sphi 0, %s18
    %s22 = sphi 0, %s21
    %s38 = sphi 0, %s22
    %s42 = sphi 0, %s42
    %s44 = sphi 0, %s42
    %s45 = sphi 0, %s44
    %s59 = sphi 0, %s45
    %s65 = sphi 0, %s67
    %s68 = sphi 0, %s65
    %s69 = sphi 0, %s68
    %s85 = sphi 0, %s69
  $region4: #{tpu_custom_call.1} parent=0 // loop_header_branch
    %11 = sbr.rel (%p9) target = $region8
  $region5: #{tpu_custom_call.1} parent=0 // loop_body
    %s13 = ssub.s32 %s8, 1
    %s14 = ssub.s32 %s8, 2
    %s15 = sadd.s32 %s8, 1
    %s16 = ssub.s32 %s8, %s15
    %p17 = scmp.eq.s32.totalorder %s16, 0
    %s19 = sadd.s32 %s18, 1
    %s20 = scalar_select %p17, %s18, %s19
    %p23 = pneg %p17
    %p24 = scmp.eq.s32.totalorder %s8, 1
    %p25 = por %p23, %p24
    %p26 = scmp.ne.s32.totalorder %s18, %s21
    %p27 = scmp.eq.s32.totalorder %s8, 0
    %p28 = por %p26, %p27
    %p29 = scmp.ne.s32.totalorder %s18, %s21
    %p30 = scmp.eq.s32.totalorder %s13, 1
    %p31 = por %p29, %p30
    %p32 = scmp.ne.s32.totalorder %s21, %s22
    %p33 = scmp.eq.s32.totalorder %s13, 0
    %p34 = por %p32, %p33
    %p35 = scmp.ne.s32.totalorder %s21, %s22
    %p36 = scmp.eq.s32.totalorder %s14, 1
    %p37 = por %p35, %p36
    %p39 = scmp.ne.s32.totalorder %s22, %s38
    %p40 = scmp.eq.s32.totalorder %s14, 0
    %p41 = por %p39, %p40
    %s43 = sadd.s32 %s42, 1
    %p46 = scmp.eq.s32.totalorder %s8, 1
    %p47 = scmp.ne.s32.totalorder %s42, %s44
    %p48 = scmp.eq.s32.totalorder %s8, 0
    %p49 = por %p47, %p48
    %p50 = scmp.ne.s32.totalorder %s42, %s44
    %p51 = scmp.eq.s32.totalorder %s13, 1
    %p52 = por %p50, %p51
    %p53 = scmp.ne.s32.totalorder %s44, %s45
    %p54 = scmp.eq.s32.totalorder %s13, 0
    %p55 = por %p53, %p54
    %p56 = scmp.ne.s32.totalorder %s44, %s45
    %p57 = scmp.eq.s32.totalorder %s14, 1
    %p58 = por %p56, %p57
    %p60 = scmp.ne.s32.totalorder %s45, %s59
    %p61 = scmp.eq.s32.totalorder %s14, 0
    %p62 = por %p60, %p61
    %s63 = ssub.s32 %s8, %s15
    %p64 = scmp.eq.s32.totalorder %s63, 0
    %s66 = sadd.s32 %s65, 1
    %s67 = scalar_select %p64, %s65, %s66
    %p70 = pneg %p64
    %p71 = scmp.eq.s32.totalorder %s8, 1
    %p72 = por %p70, %p71
    %p73 = scmp.ne.s32.totalorder %s65, %s68
    %p74 = scmp.eq.s32.totalorder %s8, 0
    %p75 = por %p73, %p74
    %p76 = scmp.ne.s32.totalorder %s65, %s68
    %p77 = scmp.eq.s32.totalorder %s13, 1
    %p78 = por %p76, %p77
    %p79 = scmp.ne.s32.totalorder %s68, %s69
    %p80 = scmp.eq.s32.totalorder %s13, 0
    %p81 = por %p79, %p80
    %p82 = scmp.ne.s32.totalorder %s68, %s69
    %p83 = scmp.eq.s32.totalorder %s14, 1
    %p84 = por %p82, %p83
    %p86 = scmp.ne.s32.totalorder %s69, %s85
    %p87 = scmp.eq.s32.totalorder %s14, 0
    %p88 = por %p86, %p87
    %p89 = scmp.le.s32.totalorder 1, %s8
    %p90 = scmp.lt.s32.totalorder %s8, 3
    %p91 = pnand %p89, %p90
    %p92 = pneg %p91
    // Predicated region
    $region9: #{tpu_custom_call.1} parent=5 // pred_check
      _
    $region10: #{tpu_custom_call.1} parent=5 // pred_check_branch
      %94 = sbr.rel (%p91) target = $region12
    $region11: #{tpu_custom_call.1} parent=5 // pred_region
      %s95 = ssub.s32 %s8, 1
      // Predicated region
      $region13: #{tpu_custom_call.1} parent=11 // pred_check
        %p96 = pneg %p55
      $region14: #{tpu_custom_call.1} parent=11 // pred_check_branch
        %98 = sbr.rel (%p96) target = $region16
      $region15: #{tpu_custom_call.1} parent=11 // pred_region
        _
      $region16: #{tpu_custom_call.1} parent=11 // pred_fallthru
        _
    $region12: #{tpu_custom_call.1} parent=5 // pred_fallthru
      _
    %p99 = scmp.lt.s32.totalorder %s8, 2
    // Predicated region
    $region17: #{tpu_custom_call.1} parent=5 // pred_check
      %p100 = pneg %p99
    $region18: #{tpu_custom_call.1} parent=5 // pred_check_branch
      %102 = sbr.rel (%p100) target = $region20
    $region19: #{tpu_custom_call.1} parent=5 // pred_region
      // Predicated region
      $region21: #{tpu_custom_call.1} parent=19 // pred_check
        %p103 = pneg %p28
      $region22: #{tpu_custom_call.1} parent=19 // pred_check_branch
        %105 = sbr.rel (%p103) target = $region24
      $region23: #{tpu_custom_call.1} parent=19 // pred_region
        %p106 = scmp.lt.s32.totalorder %s8, 1
        %s107 = scalar_select %p106, %s8, 1
        %s108 = smul.addr %s107, 4
        %s109 = scalar_lea.vmem %s0, %s108
      $region24: #{tpu_custom_call.1} parent=19 // pred_fallthru
        _
    $region20: #{tpu_custom_call.1} parent=5 // pred_fallthru
      _
    %p110 = scmp.le.s32.totalorder 1, %s8
    %p111 = scmp.lt.s32.totalorder %s8, 3
    %p112 = pnand %p110, %p111
    %p113 = pneg %p112
    // Predicated region
    $region25: #{tpu_custom_call.1} parent=5 // pred_check
      _
    $region26: #{tpu_custom_call.1} parent=5 // pred_check_branch
      %115 = sbr.rel (%p112) target = $region28
    $region27: #{tpu_custom_call.1} parent=5 // pred_region
      %s116 = ssub.s32 %s8, 1
      %p117 = scmp.lt.s32.totalorder %s13, 1
      %s118 = scalar_select %p117, %s13, 1
      %s119 = smul.addr %s118, 4
      %s120 = scalar_lea.vmem %s0, %s119
      %p121 = pneg %p34
      %p122 = pneg %p31
      %p123 = pneg %p55
      %p124 = pneg %p52
      %p125 = pneg %p81
      %p126 = pneg %p78
      %s127 = smul.u32 16, %s13
      %p128 = scmp.lt.s32.totalorder %s127, 31
      %s129 = scalar_select %p128, %s127, 31
      %s130 = smul.addr %s129, 8
      %s131 = scalar_lea.vmem %s2, %s130
      %p132 = scmp.lt.s32.totalorder %s13, 1
      %s133 = scalar_select %p132, %s13, 1
      %s134 = smul.addr %s133, 4
      %s135 = scalar_lea.vmem %s0, %s134
      %s136 = smul.u32 16, %s13
      %p137 = scmp.lt.s32.totalorder %s136, 31
      %s138 = scalar_select %p137, %s136, 31
      %s139 = smul.addr %s138, 8
      %s140 = scalar_lea.vmem %s2, %s139
      %s141 = smul.u32 16, %s13
      %v142 = vld [vmem:[%s135] sm:$0x1]
      %v143 = vld [vmem:[%s135 + $0x1] sm:$0x1]
      %v144 = vld [vmem:[%s135 + $0x2] sm:$0x1]
      %v145 = vld [vmem:[%s1] sm:$0xff]
      %v146 = vld [vmem:[%s1 + $0x8] sm:$0xff]
      %v147 = vld [vmem:[%s1 + $0x10] sm:$0xff]
      %v148 = vld [vmem:[%s1 + $0x18] sm:$0xff]
      %v149 = vld [vmem:[%s1 + $0x20] sm:$0xff]
      %v150 = vld [vmem:[%s1 + $0x28] sm:$0xff]
      %152 = vset.pattern.permute.xlu0 0
      %153 = vperm.xlu0 %152, %v145
      %v154 = vpop.permute.xlu0 %153
      %157 = vset.pattern.permute.xlu0 0
      %158 = vperm.xlu0 %157, %v146
      %v159 = vpop.permute.xlu0 %158
      %162 = vset.pattern.permute.xlu0 0
      %163 = vperm.xlu0 %162, %v147
      %v164 = vpop.permute.xlu0 %163
      %167 = vset.pattern.permute.xlu0 0
      %168 = vperm.xlu0 %167, %v148
      %v169 = vpop.permute.xlu0 %168
      %172 = vset.pattern.permute.xlu0 0
      %173 = vperm.xlu0 %172, %v149
      %v174 = vpop.permute.xlu0 %173
      %177 = vset.pattern.permute.xlu0 0
      %178 = vperm.xlu0 %177, %v150
      %v179 = vpop.permute.xlu0 %178
      %v181 = vlaneseq
      %v182 = vshrl.u32 %v181, 7
      %v183 = vsub.s32 0, %v182
      %v184 = vrot.slane %v142, %v183
      %v185 = vmul.f32 %v154, %v184
      %v186 = vmul.f32 %v159, %v184
      %v187 = vmul.f32 %v164, %v184
      %v188 = vmul.f32 %v169, %v184
      %v189 = vmul.f32 %v174, %v184
      %v190 = vmul.f32 %v179, %v184
      %191 = vset.pattern.permute.xlu0 1
      %192 = vperm.xlu0 %191, %v145
      %v193 = vpop.permute.xlu0 %192
      %195 = vset.pattern.permute.xlu0 1
      %196 = vperm.xlu0 %195, %v146
      %v197 = vpop.permute.xlu0 %196
      %199 = vset.pattern.permute.xlu0 1
      %200 = vperm.xlu0 %199, %v147
      %v201 = vpop.permute.xlu0 %200
      %203 = vset.pattern.permute.xlu0 1
      %204 = vperm.xlu0 %203, %v148
      %v205 = vpop.permute.xlu0 %204
      %207 = vset.pattern.permute.xlu0 1
      %208 = vperm.xlu0 %207, %v149
      %v209 = vpop.permute.xlu0 %208
      %211 = vset.pattern.permute.xlu0 1
      %212 = vperm.xlu0 %211, %v150
      %v213 = vpop.permute.xlu0 %212
      %v215 = vlaneseq
      %v216 = vshrl.u32 %v215, 7
      %v217 = vsub.s32 0, %v216
      %v218 = vrot.slane %v143, %v217
      %v219 = vmul.f32 %v193, %v218
      %v220 = vmul.f32 %v197, %v218
      %v221 = vmul.f32 %v201, %v218
      %v222 = vmul.f32 %v205, %v218
      %v223 = vmul.f32 %v209, %v218
      %v224 = vmul.f32 %v213, %v218
      %v225 = vadd.f32 %v185, %v219
      %v226 = vadd.f32 %v186, %v220
      %v227 = vadd.f32 %v187, %v221
      %v228 = vadd.f32 %v188, %v222
      %v229 = vadd.f32 %v189, %v223
      %v230 = vadd.f32 %v190, %v224
      %231 = vset.pattern.permute.xlu0 2
      %232 = vperm.xlu0 %231, %v145
      %v233 = vpop.permute.xlu0 %232
      %235 = vset.pattern.permute.xlu0 2
      %236 = vperm.xlu0 %235, %v146
      %v237 = vpop.permute.xlu0 %236
      %239 = vset.pattern.permute.xlu0 2
      %240 = vperm.xlu0 %239, %v147
      %v241 = vpop.permute.xlu0 %240
      %243 = vset.pattern.permute.xlu0 2
      %244 = vperm.xlu0 %243, %v148
      %v245 = vpop.permute.xlu0 %244
      %247 = vset.pattern.permute.xlu0 2
      %248 = vperm.xlu0 %247, %v149
      %v249 = vpop.permute.xlu0 %248
      %251 = vset.pattern.permute.xlu0 2
      %252 = vperm.xlu0 %251, %v150
      %v253 = vpop.permute.xlu0 %252
      %v255 = vlaneseq
      %v256 = vshrl.u32 %v255, 7
      %v257 = vsub.s32 0, %v256
      %v258 = vrot.slane %v144, %v257
      %v259 = vmul.f32 %v233, %v258
      %v260 = vmul.f32 %v237, %v258
      %v261 = vmul.f32 %v241, %v258
      %v262 = vmul.f32 %v245, %v258
      %v263 = vmul.f32 %v249, %v258
      %v264 = vmul.f32 %v253, %v258
      %v265 = vadd.f32 %v225, %v259
      %v266 = vadd.f32 %v226, %v260
      %v267 = vadd.f32 %v227, %v261
      %v268 = vadd.f32 %v228, %v262
      %v269 = vadd.f32 %v229, %v263
      %v270 = vadd.f32 %v230, %v264
      %271 = vset.pattern.permute.xlu0 3
      %272 = vperm.xlu0 %271, %v145
      %v273 = vpop.permute.xlu0 %272
      %275 = vset.pattern.permute.xlu0 3
      %276 = vperm.xlu0 %275, %v146
      %v277 = vpop.permute.xlu0 %276
      %279 = vset.pattern.permute.xlu0 3
      %280 = vperm.xlu0 %279, %v147
      %v281 = vpop.permute.xlu0 %280
      %283 = vset.pattern.permute.xlu0 3
      %284 = vperm.xlu0 %283, %v148
      %v285 = vpop.permute.xlu0 %284
      %287 = vset.pattern.permute.xlu0 3
      %288 = vperm.xlu0 %287, %v149
      %v289 = vpop.permute.xlu0 %288
      %291 = vset.pattern.permute.xlu0 3
      %292 = vperm.xlu0 %291, %v150
      %v293 = vpop.permute.xlu0 %292
      %v295 = vadd.f32 %v265, %v273
      %v296 = vadd.f32 %v266, %v277
      %v297 = vadd.f32 %v267, %v281
      %v298 = vadd.f32 %v268, %v285
      %v299 = vadd.f32 %v269, %v289
      %v300 = vadd.f32 %v270, %v293
      %v301 = vand.u32 2147483647, %v295
      %vm302 = vcmp.le.f32.partialorder %v301, 0.7853982
      %vm303 = vcmp.lt.s32.totalorder %v295, 0
      %v304 = vand.u32 %v295, 2139095040
      %v305 = vshrl.u32 %v304, 23
      %v306 = vsub.s32 %v305, 127
      %v307 = vand.u32 2147483647, %v295
      %v308 = vand.u32 %v307, 8388607
      %v309 = vor.u32 %v308, 8388608
      %v310 = vsub.s32 0, %v309
      %v311 = vadd.s32 %v306, 1
      %vm312 = vcmp.gt.s32.totalorder %v311, 0
      %v313 = vsel %vm312, %v311, 0
      %v314 = vshrl.u32 %v313, 5
      %v315 = vand.u32 %v313, 31
      %v316 = vsub.s32 32, %v315
      %v317 = vshrl.u32 683565275, %v316
      %v318 = vshll.u32 683565275, %v315
      %v319 = vshrl.u32 2475754826, %v316
      %v320 = vor.u32 %v318, %v319
      %v321 = vshll.u32 2475754826, %v315
      %v322 = vshrl.u32 2131351028, %v316
      %v323 = vor.u32 %v321, %v322
      %v324 = vshll.u32 2131351028, %v315
      %v325 = vshrl.u32 2102212464, %v316
      %v326 = vor.u32 %v324, %v325
      %v327 = vshll.u32 2102212464, %v315
      %v328 = vshrl.u32 920167782, %v316
      %v329 = vor.u32 %v327, %v328
      %v330 = vshll.u32 920167782, %v315
      %v331 = vshrl.u32 1326507024, %v316
      %v332 = vor.u32 %v330, %v331
      %vm333 = vcmp.lt.s32.totalorder %v314, 1
      %vm334 = vcmp.lt.s32.totalorder %v314, 2
      %vm335 = vcmp.lt.s32.totalorder %v314, 3
      %vm336 = vcmp.lt.s32.totalorder %v314, 4
      %v337 = vsel %vm333, %v317, %v320
      %v338 = vsel %vm336, %v326, 2102212464
      %v339 = vsel %vm335, %v323, %v338
      %v340 = vsel %vm334, %v337, %v339
      %v341 = vsel %vm333, %v320, %v323
      %v342 = vsel %vm336, %v329, 920167782
      %v343 = vsel %vm335, %v326, %v342
      %v344 = vsel %vm334, %v341, %v343
      %v345 = vsel %vm333, %v323, %v326
      %v346 = vsel %vm336, %v332, 1326507024
      %v347 = vsel %vm335, %v329, %v346
      %v348 = vsel %vm334, %v345, %v347
      %v349 = vshll.u32 %v309, 8
      %v350 = vmul.u32.u64.compose %v349, %v348
      %v351 = vextract.low.u32 %v350
      %v352 = vextract.high.u32 %v350
      %v353 = vmul.u32.u64.compose %v349, %v344
      %v354 = vextract.low.u32 %v353
      %v355 = vextract.high.u32 %v353
      %v356 = vmul.u32 %v349, %v340
      %v357 = vadd.s32 %v352, %v354
      %vm358 = vc.u32 %v352, %v354
      %v359 = vadd.s32 %v355, 1
      %v360 = vsel %vm358, %v359, %v355
      %v361 = vadd.s32 %v356, %v360
      %v362 = vadd.s32 %v361, 536870912
      %v363 = vshrl.u32 %v362, 30
      %v364 = vshll.u32 %v363, 30
      %v365 = vsub.s32 %v361, %v364
      %vm366 = vcmp.lt.s32.totalorder %v365, 0
      %v367 = vsub.s32 0, %v365
      %v368 = vsel %vm366, %v367, %v365
      %v369 = vclz %v368
      %v370 = vsub.s32 %v369, 2
      %vm371 = vcmp.gt.s32.totalorder 0, %v370
      %v372 = vsel %vm371, 0, %v370
      %v373 = vsub.s32 32, %v372
      %v374 = vshll.u32 %v365, %v372
      %v375 = vshrl.u32 %v357, %v373
      %v376 = vor.u32 %v374, %v375
      %v377 = vsub.s32 4294967266, %v372
      %v378 = vadd.s32 %v377, 127
      %v379 = vshll.u32 %v378, 23
      %v380 = vor.u32 4788187, %v379
      %v381 = vand.u32 2147483647, %v380
      %v383 = vcvt.s32.f32 %v376
      %v384 = vmul.f32 %v383, %v381
      %v385 = vxor.u32 %v384, 2147483648
      %v386 = vsel %vm303, %v385, %v384
      %v387 = vsub.s32 4, %v363
      %v388 = vsel %vm303, %v387, %v363
      %v389 = vsel %vm302, %v295, %v386
      %v390 = vsel %vm302, 0, %v388
      %v391 = vcosq.f32.pop %v389
      %v392 = vsinq.f32.pop %v389
      %vm393 = vweird.f32 %v295
      %v394 = vadd.s32 %v390, 3
      %v395 = vand.u32 %v394, 3
      %vm396 = vcmp.lt.s32.totalorder %v395, 2
      %vm397 = vcmp.eq.s32.totalorder %v395, 0
      %v398 = vxor.u32 %v392, 2147483648
      %v399 = vsel %vm397, %v391, %v398
      %vm400 = vcmp.eq.s32.totalorder %v395, 2
      %v401 = vxor.u32 %v391, 2147483648
      %v402 = vsel %vm400, %v401, %v392
      %v403 = vsel %vm396, %v399, %v402
      %v404 = vsel %vm393, nan, %v403
      %v405 = vand.u32 2147483647, %v296
      %vm406 = vcmp.le.f32.partialorder %v405, 0.7853982
      %vm407 = vcmp.lt.s32.totalorder %v296, 0
      %v408 = vand.u32 %v296, 2139095040
      %v409 = vshrl.u32 %v408, 23
      %v410 = vsub.s32 %v409, 127
      %v411 = vand.u32 2147483647, %v296
      %v412 = vand.u32 %v411, 8388607
      %v413 = vor.u32 %v412, 8388608
      %v414 = vsub.s32 0, %v413
      %v415 = vadd.s32 %v410, 1
      %vm416 = vcmp.gt.s32.totalorder %v415, 0
      %v417 = vsel %vm416, %v415, 0
      %v418 = vshrl.u32 %v417, 5
      %v419 = vand.u32 %v417, 31
      %v420 = vsub.s32 32, %v419
      %v421 = vshrl.u32 683565275, %v420
      %v422 = vshll.u32 683565275, %v419
      %v423 = vshrl.u32 2475754826, %v420
      %v424 = vor.u32 %v422, %v423
      %v425 = vshll.u32 2475754826, %v419
      %v426 = vshrl.u32 2131351028, %v420
      %v427 = vor.u32 %v425, %v426
      %v428 = vshll.u32 2131351028, %v419
      %v429 = vshrl.u32 2102212464, %v420
      %v430 = vor.u32 %v428, %v429
      %v431 = vshll.u32 2102212464, %v419
      %v432 = vshrl.u32 920167782, %v420
      %v433 = vor.u32 %v431, %v432
      %v434 = vshll.u32 920167782, %v419
      %v435 = vshrl.u32 1326507024, %v420
      %v436 = vor.u32 %v434, %v435
      %vm437 = vcmp.lt.s32.totalorder %v418, 1
      %vm438 = vcmp.lt.s32.totalorder %v418, 2
      %vm439 = vcmp.lt.s32.totalorder %v418, 3
      %vm440 = vcmp.lt.s32.totalorder %v418, 4
      %v441 = vsel %vm437, %v421, %v424
      %v442 = vsel %vm440, %v430, 2102212464
      %v443 = vsel %vm439, %v427, %v442
      %v444 = vsel %vm438, %v441, %v443
      %v445 = vsel %vm437, %v424, %v427
      %v446 = vsel %vm440, %v433, 920167782
      %v447 = vsel %vm439, %v430, %v446
      %v448 = vsel %vm438, %v445, %v447
      %v449 = vsel %vm437, %v427, %v430
      %v450 = vsel %vm440, %v436, 1326507024
      %v451 = vsel %vm439, %v433, %v450
      %v452 = vsel %vm438, %v449, %v451
      %v453 = vshll.u32 %v413, 8
      %v454 = vmul.u32.u64.compose %v453, %v452
      %v455 = vextract.low.u32 %v454
      %v456 = vextract.high.u32 %v454
      %v457 = vmul.u32.u64.compose %v453, %v448
      %v458 = vextract.low.u32 %v457
      %v459 = vextract.high.u32 %v457
      %v460 = vmul.u32 %v453, %v444
      %v461 = vadd.s32 %v456, %v458
      %vm462 = vc.u32 %v456, %v458
      %v463 = vadd.s32 %v459, 1
      %v464 = vsel %vm462, %v463, %v459
      %v465 = vadd.s32 %v460, %v464
      %v466 = vadd.s32 %v465, 536870912
      %v467 = vshrl.u32 %v466, 30
      %v468 = vshll.u32 %v467, 30
      %v469 = vsub.s32 %v465, %v468
      %vm470 = vcmp.lt.s32.totalorder %v469, 0
      %v471 = vsub.s32 0, %v469
      %v472 = vsel %vm470, %v471, %v469
      %v473 = vclz %v472
      %v474 = vsub.s32 %v473, 2
      %vm475 = vcmp.gt.s32.totalorder 0, %v474
      %v476 = vsel %vm475, 0, %v474
      %v477 = vsub.s32 32, %v476
      %v478 = vshll.u32 %v469, %v476
      %v479 = vshrl.u32 %v461, %v477
      %v480 = vor.u32 %v478, %v479
      %v481 = vsub.s32 4294967266, %v476
      %v482 = vadd.s32 %v481, 127
      %v483 = vshll.u32 %v482, 23
      %v484 = vor.u32 4788187, %v483
      %v485 = vand.u32 2147483647, %v484
      %v487 = vcvt.s32.f32 %v480
      %v488 = vmul.f32 %v487, %v485
      %v489 = vxor.u32 %v488, 2147483648
      %v490 = vsel %vm407, %v489, %v488
      %v491 = vsub.s32 4, %v467
      %v492 = vsel %vm407, %v491, %v467
      %v493 = vsel %vm406, %v296, %v490
      %v494 = vsel %vm406, 0, %v492
      %v495 = vcosq.f32.pop %v493
      %v496 = vsinq.f32.pop %v493
      %vm497 = vweird.f32 %v296
      %v498 = vadd.s32 %v494, 3
      %v499 = vand.u32 %v498, 3
      %vm500 = vcmp.lt.s32.totalorder %v499, 2
      %vm501 = vcmp.eq.s32.totalorder %v499, 0
      %v502 = vxor.u32 %v496, 2147483648
      %v503 = vsel %vm501, %v495, %v502
      %vm504 = vcmp.eq.s32.totalorder %v499, 2
      %v505 = vxor.u32 %v495, 2147483648
      %v506 = vsel %vm504, %v505, %v496
      %v507 = vsel %vm500, %v503, %v506
      %v508 = vsel %vm497, nan, %v507
      %v509 = vand.u32 2147483647, %v297
      %vm510 = vcmp.le.f32.partialorder %v509, 0.7853982
      %vm511 = vcmp.lt.s32.totalorder %v297, 0
      %v512 = vand.u32 %v297, 2139095040
      %v513 = vshrl.u32 %v512, 23
      %v514 = vsub.s32 %v513, 127
      %v515 = vand.u32 2147483647, %v297
      %v516 = vand.u32 %v515, 8388607
      %v517 = vor.u32 %v516, 8388608
      %v518 = vsub.s32 0, %v517
      %v519 = vadd.s32 %v514, 1
      %vm520 = vcmp.gt.s32.totalorder %v519, 0
      %v521 = vsel %vm520, %v519, 0
      %v522 = vshrl.u32 %v521, 5
      %v523 = vand.u32 %v521, 31
      %v524 = vsub.s32 32, %v523
      %v525 = vshrl.u32 683565275, %v524
      %v526 = vshll.u32 683565275, %v523
      %v527 = vshrl.u32 2475754826, %v524
      %v528 = vor.u32 %v526, %v527
      %v529 = vshll.u32 2475754826, %v523
      %v530 = vshrl.u32 2131351028, %v524
      %v531 = vor.u32 %v529, %v530
      %v532 = vshll.u32 2131351028, %v523
      %v533 = vshrl.u32 2102212464, %v524
      %v534 = vor.u32 %v532, %v533
      %v535 = vshll.u32 2102212464, %v523
      %v536 = vshrl.u32 920167782, %v524
      %v537 = vor.u32 %v535, %v536
      %v538 = vshll.u32 920167782, %v523
      %v539 = vshrl.u32 1326507024, %v524
      %v540 = vor.u32 %v538, %v539
      %vm541 = vcmp.lt.s32.totalorder %v522, 1
      %vm542 = vcmp.lt.s32.totalorder %v522, 2
      %vm543 = vcmp.lt.s32.totalorder %v522, 3
      %vm544 = vcmp.lt.s32.totalorder %v522, 4
      %v545 = vsel %vm541, %v525, %v528
      %v546 = vsel %vm544, %v534, 2102212464
      %v547 = vsel %vm543, %v531, %v546
      %v548 = vsel %vm542, %v545, %v547
      %v549 = vsel %vm541, %v528, %v531
      %v550 = vsel %vm544, %v537, 920167782
      %v551 = vsel %vm543, %v534, %v550
      %v552 = vsel %vm542, %v549, %v551
      %v553 = vsel %vm541, %v531, %v534
      %v554 = vsel %vm544, %v540, 1326507024
      %v555 = vsel %vm543, %v537, %v554
      %v556 = vsel %vm542, %v553, %v555
      %v557 = vshll.u32 %v517, 8
      %v558 = vmul.u32.u64.compose %v557, %v556
      %v559 = vextract.low.u32 %v558
      %v560 = vextract.high.u32 %v558
      %v561 = vmul.u32.u64.compose %v557, %v552
      %v562 = vextract.low.u32 %v561
      %v563 = vextract.high.u32 %v561
      %v564 = vmul.u32 %v557, %v548
      %v565 = vadd.s32 %v560, %v562
      %vm566 = vc.u32 %v560, %v562
      %v567 = vadd.s32 %v563, 1
      %v568 = vsel %vm566, %v567, %v563
      %v569 = vadd.s32 %v564, %v568
      %v570 = vadd.s32 %v569, 536870912
      %v571 = vshrl.u32 %v570, 30
      %v572 = vshll.u32 %v571, 30
      %v573 = vsub.s32 %v569, %v572
      %vm574 = vcmp.lt.s32.totalorder %v573, 0
      %v575 = vsub.s32 0, %v573
      %v576 = vsel %vm574, %v575, %v573
      %v577 = vclz %v576
      %v578 = vsub.s32 %v577, 2
      %vm579 = vcmp.gt.s32.totalorder 0, %v578
      %v580 = vsel %vm579, 0, %v578
      %v581 = vsub.s32 32, %v580
      %v582 = vshll.u32 %v573, %v580
      %v583 = vshrl.u32 %v565, %v581
      %v584 = vor.u32 %v582, %v583
      %v585 = vsub.s32 4294967266, %v580
      %v586 = vadd.s32 %v585, 127
      %v587 = vshll.u32 %v586, 23
      %v588 = vor.u32 4788187, %v587
      %v589 = vand.u32 2147483647, %v588
      %v591 = vcvt.s32.f32 %v584
      %v592 = vmul.f32 %v591, %v589
      %v593 = vxor.u32 %v592, 2147483648
      %v594 = vsel %vm511, %v593, %v592
      %v595 = vsub.s32 4, %v571
      %v596 = vsel %vm511, %v595, %v571
      %v597 = vsel %vm510, %v297, %v594
      %v598 = vsel %vm510, 0, %v596
      %v599 = vcosq.f32.pop %v597
      %v600 = vsinq.f32.pop %v597
      %vm601 = vweird.f32 %v297
      %v602 = vadd.s32 %v598, 3
      %v603 = vand.u32 %v602, 3
      %vm604 = vcmp.lt.s32.totalorder %v603, 2
      %vm605 = vcmp.eq.s32.totalorder %v603, 0
      %v606 = vxor.u32 %v600, 2147483648
      %v607 = vsel %vm605, %v599, %v606
      %vm608 = vcmp.eq.s32.totalorder %v603, 2
      %v609 = vxor.u32 %v599, 2147483648
      %v610 = vsel %vm608, %v609, %v600
      %v611 = vsel %vm604, %v607, %v610
      %v612 = vsel %vm601, nan, %v611
      %v613 = vand.u32 2147483647, %v298
      %vm614 = vcmp.le.f32.partialorder %v613, 0.7853982
      %vm615 = vcmp.lt.s32.totalorder %v298, 0
      %v616 = vand.u32 %v298, 2139095040
      %v617 = vshrl.u32 %v616, 23
      %v618 = vsub.s32 %v617, 127
      %v619 = vand.u32 2147483647, %v298
      %v620 = vand.u32 %v619, 8388607
      %v621 = vor.u32 %v620, 8388608
      %v622 = vsub.s32 0, %v621
      %v623 = vadd.s32 %v618, 1
      %vm624 = vcmp.gt.s32.totalorder %v623, 0
      %v625 = vsel %vm624, %v623, 0
      %v626 = vshrl.u32 %v625, 5
      %v627 = vand.u32 %v625, 31
      %v628 = vsub.s32 32, %v627
      %v629 = vshrl.u32 683565275, %v628
      %v630 = vshll.u32 683565275, %v627
      %v631 = vshrl.u32 2475754826, %v628
      %v632 = vor.u32 %v630, %v631
      %v633 = vshll.u32 2475754826, %v627
      %v634 = vshrl.u32 2131351028, %v628
      %v635 = vor.u32 %v633, %v634
      %v636 = vshll.u32 2131351028, %v627
      %v637 = vshrl.u32 2102212464, %v628
      %v638 = vor.u32 %v636, %v637
      %v639 = vshll.u32 2102212464, %v627
      %v640 = vshrl.u32 920167782, %v628
      %v641 = vor.u32 %v639, %v640
      %v642 = vshll.u32 920167782, %v627
      %v643 = vshrl.u32 1326507024, %v628
      %v644 = vor.u32 %v642, %v643
      %vm645 = vcmp.lt.s32.totalorder %v626, 1
      %vm646 = vcmp.lt.s32.totalorder %v626, 2
      %vm647 = vcmp.lt.s32.totalorder %v626, 3
      %vm648 = vcmp.lt.s32.totalorder %v626, 4
      %v649 = vsel %vm645, %v629, %v632
      %v650 = vsel %vm648, %v638, 2102212464
      %v651 = vsel %vm647, %v635, %v650
      %v652 = vsel %vm646, %v649, %v651
      %v653 = vsel %vm645, %v632, %v635
      %v654 = vsel %vm648, %v641, 920167782
      %v655 = vsel %vm647, %v638, %v654
      %v656 = vsel %vm646, %v653, %v655
      %v657 = vsel %vm645, %v635, %v638
      %v658 = vsel %vm648, %v644, 1326507024
      %v659 = vsel %vm647, %v641, %v658
      %v660 = vsel %vm646, %v657, %v659
      %v661 = vshll.u32 %v621, 8
      %v662 = vmul.u32.u64.compose %v661, %v660
      %v663 = vextract.low.u32 %v662
      %v664 = vextract.high.u32 %v662
      %v665 = vmul.u32.u64.compose %v661, %v656
      %v666 = vextract.low.u32 %v665
      %v667 = vextract.high.u32 %v665
      %v668 = vmul.u32 %v661, %v652
      %v669 = vadd.s32 %v664, %v666
      %vm670 = vc.u32 %v664, %v666
      %v671 = vadd.s32 %v667, 1
      %v672 = vsel %vm670, %v671, %v667
      %v673 = vadd.s32 %v668, %v672
      %v674 = vadd.s32 %v673, 536870912
      %v675 = vshrl.u32 %v674, 30
      %v676 = vshll.u32 %v675, 30
      %v677 = vsub.s32 %v673, %v676
      %vm678 = vcmp.lt.s32.totalorder %v677, 0
      %v679 = vsub.s32 0, %v677
      %v680 = vsel %vm678, %v679, %v677
      %v681 = vclz %v680
      %v682 = vsub.s32 %v681, 2
      %vm683 = vcmp.gt.s32.totalorder 0, %v682
      %v684 = vsel %vm683, 0, %v682
      %v685 = vsub.s32 32, %v684
      %v686 = vshll.u32 %v677, %v684
      %v687 = vshrl.u32 %v669, %v685
      %v688 = vor.u32 %v686, %v687
      %v689 = vsub.s32 4294967266, %v684
      %v690 = vadd.s32 %v689, 127
      %v691 = vshll.u32 %v690, 23
      %v692 = vor.u32 4788187, %v691
      %v693 = vand.u32 2147483647, %v692
      %v695 = vcvt.s32.f32 %v688
      %v696 = vmul.f32 %v695, %v693
      %v697 = vxor.u32 %v696, 2147483648
      %v698 = vsel %vm615, %v697, %v696
      %v699 = vsub.s32 4, %v675
      %v700 = vsel %vm615, %v699, %v675
      %v701 = vsel %vm614, %v298, %v698
      %v702 = vsel %vm614, 0, %v700
      %v703 = vcosq.f32.pop %v701
      %v704 = vsinq.f32.pop %v701
      %vm705 = vweird.f32 %v298
      %v706 = vadd.s32 %v702, 3
      %v707 = vand.u32 %v706, 3
      %vm708 = vcmp.lt.s32.totalorder %v707, 2
      %vm709 = vcmp.eq.s32.totalorder %v707, 0
      %v710 = vxor.u32 %v704, 2147483648
      %v711 = vsel %vm709, %v703, %v710
      %vm712 = vcmp.eq.s32.totalorder %v707, 2
      %v713 = vxor.u32 %v703, 2147483648
      %v714 = vsel %vm712, %v713, %v704
      %v715 = vsel %vm708, %v711, %v714
      %v716 = vsel %vm705, nan, %v715
      %v717 = vand.u32 2147483647, %v299
      %vm718 = vcmp.le.f32.partialorder %v717, 0.7853982
      %vm719 = vcmp.lt.s32.totalorder %v299, 0
      %v720 = vand.u32 %v299, 2139095040
      %v721 = vshrl.u32 %v720, 23
      %v722 = vsub.s32 %v721, 127
      %v723 = vand.u32 2147483647, %v299
      %v724 = vand.u32 %v723, 8388607
      %v725 = vor.u32 %v724, 8388608
      %v726 = vsub.s32 0, %v725
      %v727 = vadd.s32 %v722, 1
      %vm728 = vcmp.gt.s32.totalorder %v727, 0
      %v729 = vsel %vm728, %v727, 0
      %v730 = vshrl.u32 %v729, 5
      %v731 = vand.u32 %v729, 31
      %v732 = vsub.s32 32, %v731
      %v733 = vshrl.u32 683565275, %v732
      %v734 = vshll.u32 683565275, %v731
      %v735 = vshrl.u32 2475754826, %v732
      %v736 = vor.u32 %v734, %v735
      %v737 = vshll.u32 2475754826, %v731
      %v738 = vshrl.u32 2131351028, %v732
      %v739 = vor.u32 %v737, %v738
      %v740 = vshll.u32 2131351028, %v731
      %v741 = vshrl.u32 2102212464, %v732
      %v742 = vor.u32 %v740, %v741
      %v743 = vshll.u32 2102212464, %v731
      %v744 = vshrl.u32 920167782, %v732
      %v745 = vor.u32 %v743, %v744
      %v746 = vshll.u32 920167782, %v731
      %v747 = vshrl.u32 1326507024, %v732
      %v748 = vor.u32 %v746, %v747
      %vm749 = vcmp.lt.s32.totalorder %v730, 1
      %vm750 = vcmp.lt.s32.totalorder %v730, 2
      %vm751 = vcmp.lt.s32.totalorder %v730, 3
      %vm752 = vcmp.lt.s32.totalorder %v730, 4
      %v753 = vsel %vm749, %v733, %v736
      %v754 = vsel %vm752, %v742, 2102212464
      %v755 = vsel %vm751, %v739, %v754
      %v756 = vsel %vm750, %v753, %v755
      %v757 = vsel %vm749, %v736, %v739
      %v758 = vsel %vm752, %v745, 920167782
      %v759 = vsel %vm751, %v742, %v758
      %v760 = vsel %vm750, %v757, %v759
      %v761 = vsel %vm749, %v739, %v742
      %v762 = vsel %vm752, %v748, 1326507024
      %v763 = vsel %vm751, %v745, %v762
      %v764 = vsel %vm750, %v761, %v763
      %v765 = vshll.u32 %v725, 8
      %v766 = vmul.u32.u64.compose %v765, %v764
      %v767 = vextract.low.u32 %v766
      %v768 = vextract.high.u32 %v766
      %v769 = vmul.u32.u64.compose %v765, %v760
      %v770 = vextract.low.u32 %v769
      %v771 = vextract.high.u32 %v769
      %v772 = vmul.u32 %v765, %v756
      %v773 = vadd.s32 %v768, %v770
      %vm774 = vc.u32 %v768, %v770
      %v775 = vadd.s32 %v771, 1
      %v776 = vsel %vm774, %v775, %v771
      %v777 = vadd.s32 %v772, %v776
      %v778 = vadd.s32 %v777, 536870912
      %v779 = vshrl.u32 %v778, 30
      %v780 = vshll.u32 %v779, 30
      %v781 = vsub.s32 %v777, %v780
      %vm782 = vcmp.lt.s32.totalorder %v781, 0
      %v783 = vsub.s32 0, %v781
      %v784 = vsel %vm782, %v783, %v781
      %v785 = vclz %v784
      %v786 = vsub.s32 %v785, 2
      %vm787 = vcmp.gt.s32.totalorder 0, %v786
      %v788 = vsel %vm787, 0, %v786
      %v789 = vsub.s32 32, %v788
      %v790 = vshll.u32 %v781, %v788
      %v791 = vshrl.u32 %v773, %v789
      %v792 = vor.u32 %v790, %v791
      %v793 = vsub.s32 4294967266, %v788
      %v794 = vadd.s32 %v793, 127
      %v795 = vshll.u32 %v794, 23
      %v796 = vor.u32 4788187, %v795
      %v797 = vand.u32 2147483647, %v796
      %v799 = vcvt.s32.f32 %v792
      %v800 = vmul.f32 %v799, %v797
      %v801 = vxor.u32 %v800, 2147483648
      %v802 = vsel %vm719, %v801, %v800
      %v803 = vsub.s32 4, %v779
      %v804 = vsel %vm719, %v803, %v779
      %v805 = vsel %vm718, %v299, %v802
      %v806 = vsel %vm718, 0, %v804
      %v807 = vcosq.f32.pop %v805
      %v808 = vsinq.f32.pop %v805
      %vm809 = vweird.f32 %v299
      %v810 = vadd.s32 %v806, 3
      %v811 = vand.u32 %v810, 3
      %vm812 = vcmp.lt.s32.totalorder %v811, 2
      %vm813 = vcmp.eq.s32.totalorder %v811, 0
      %v814 = vxor.u32 %v808, 2147483648
      %v815 = vsel %vm813, %v807, %v814
      %vm816 = vcmp.eq.s32.totalorder %v811, 2
      %v817 = vxor.u32 %v807, 2147483648
      %v818 = vsel %vm816, %v817, %v808
      %v819 = vsel %vm812, %v815, %v818
      %v820 = vsel %vm809, nan, %v819
      %v821 = vand.u32 2147483647, %v300
      %vm822 = vcmp.le.f32.partialorder %v821, 0.7853982
      %vm823 = vcmp.lt.s32.totalorder %v300, 0
      %v824 = vand.u32 %v300, 2139095040
      %v825 = vshrl.u32 %v824, 23
      %v826 = vsub.s32 %v825, 127
      %v827 = vand.u32 2147483647, %v300
      %v828 = vand.u32 %v827, 8388607
      %v829 = vor.u32 %v828, 8388608
      %v830 = vsub.s32 0, %v829
      %v831 = vadd.s32 %v826, 1
      %vm832 = vcmp.gt.s32.totalorder %v831, 0
      %v833 = vsel %vm832, %v831, 0
      %v834 = vshrl.u32 %v833, 5
      %v835 = vand.u32 %v833, 31
      %v836 = vsub.s32 32, %v835
      %v837 = vshrl.u32 683565275, %v836
      %v838 = vshll.u32 683565275, %v835
      %v839 = vshrl.u32 2475754826, %v836
      %v840 = vor.u32 %v838, %v839
      %v841 = vshll.u32 2475754826, %v835
      %v842 = vshrl.u32 2131351028, %v836
      %v843 = vor.u32 %v841, %v842
      %v844 = vshll.u32 2131351028, %v835
      %v845 = vshrl.u32 2102212464, %v836
      %v846 = vor.u32 %v844, %v845
      %v847 = vshll.u32 2102212464, %v835
      %v848 = vshrl.u32 920167782, %v836
      %v849 = vor.u32 %v847, %v848
      %v850 = vshll.u32 920167782, %v835
      %v851 = vshrl.u32 1326507024, %v836
      %v852 = vor.u32 %v850, %v851
      %vm853 = vcmp.lt.s32.totalorder %v834, 1
      %vm854 = vcmp.lt.s32.totalorder %v834, 2
      %vm855 = vcmp.lt.s32.totalorder %v834, 3
      %vm856 = vcmp.lt.s32.totalorder %v834, 4
      %v857 = vsel %vm853, %v837, %v840
      %v858 = vsel %vm856, %v846, 2102212464
      %v859 = vsel %vm855, %v843, %v858
      %v860 = vsel %vm854, %v857, %v859
      %v861 = vsel %vm853, %v840, %v843
      %v862 = vsel %vm856, %v849, 920167782
      %v863 = vsel %vm855, %v846, %v862
      %v864 = vsel %vm854, %v861, %v863
      %v865 = vsel %vm853, %v843, %v846
      %v866 = vsel %vm856, %v852, 1326507024
      %v867 = vsel %vm855, %v849, %v866
      %v868 = vsel %vm854, %v865, %v867
      %v869 = vshll.u32 %v829, 8
      %v870 = vmul.u32.u64.compose %v869, %v868
      %v871 = vextract.low.u32 %v870
      %v872 = vextract.high.u32 %v870
      %v873 = vmul.u32.u64.compose %v869, %v864
      %v874 = vextract.low.u32 %v873
      %v875 = vextract.high.u32 %v873
      %v876 = vmul.u32 %v869, %v860
      %v877 = vadd.s32 %v872, %v874
      %vm878 = vc.u32 %v872, %v874
      %v879 = vadd.s32 %v875, 1
      %v880 = vsel %vm878, %v879, %v875
      %v881 = vadd.s32 %v876, %v880
      %v882 = vadd.s32 %v881, 536870912
      %v883 = vshrl.u32 %v882, 30
      %v884 = vshll.u32 %v883, 30
      %v885 = vsub.s32 %v881, %v884
      %vm886 = vcmp.lt.s32.totalorder %v885, 0
      %v887 = vsub.s32 0, %v885
      %v888 = vsel %vm886, %v887, %v885
      %v889 = vclz %v888
      %v890 = vsub.s32 %v889, 2
      %vm891 = vcmp.gt.s32.totalorder 0, %v890
      %v892 = vsel %vm891, 0, %v890
      %v893 = vsub.s32 32, %v892
      %v894 = vshll.u32 %v885, %v892
      %v895 = vshrl.u32 %v877, %v893
      %v896 = vor.u32 %v894, %v895
      %v897 = vsub.s32 4294967266, %v892
      %v898 = vadd.s32 %v897, 127
      %v899 = vshll.u32 %v898, 23
      %v900 = vor.u32 4788187, %v899
      %v901 = vand.u32 2147483647, %v900
      %v903 = vcvt.s32.f32 %v896
      %v904 = vmul.f32 %v903, %v901
      %v905 = vxor.u32 %v904, 2147483648
      %v906 = vsel %vm823, %v905, %v904
      %v907 = vsub.s32 4, %v883
      %v908 = vsel %vm823, %v907, %v883
      %v909 = vsel %vm822, %v300, %v906
      %v910 = vsel %vm822, 0, %v908
      %v911 = vcosq.f32.pop %v909
      %v912 = vsinq.f32.pop %v909
      %vm913 = vweird.f32 %v300
      %v914 = vadd.s32 %v910, 3
      %v915 = vand.u32 %v914, 3
      %vm916 = vcmp.lt.s32.totalorder %v915, 2
      %vm917 = vcmp.eq.s32.totalorder %v915, 0
      %v918 = vxor.u32 %v912, 2147483648
      %v919 = vsel %vm917, %v911, %v918
      %vm920 = vcmp.eq.s32.totalorder %v915, 2
      %v921 = vxor.u32 %v911, 2147483648
      %v922 = vsel %vm920, %v921, %v912
      %v923 = vsel %vm916, %v919, %v922
      %v924 = vsel %vm913, nan, %v923
      %925 = vxpose.xlu0.b32.start [1/16] %v404, 128
      %926 = vxpose.xlu0.b32.cont [2/16] %v508, 128
      %927 = vxpose.xlu0.b32.cont [3/16] %v612, 128
      %928 = vxpose.xlu0.b32.cont [4/16] %v716, 128
      %929 = vxpose.xlu0.b32.cont [5/16] %v820, 128
      %930 = vxpose.xlu0.b32.cont [6/16] %v924, 128
      %931 = vxpose.xlu0.b32.cont [7/16] 0.0, 128
      %932 = vxpose.xlu0.b32.cont [8/16] 0.0, 128
      %933 = vxpose.xlu0.b32.cont [9/16] 0.0, 128
      %934 = vxpose.xlu0.b32.cont [10/16] 0.0, 128
      %935 = vxpose.xlu0.b32.cont [11/16] 0.0, 128
      %936 = vxpose.xlu0.b32.cont [12/16] 0.0, 128
      %937 = vxpose.xlu0.b32.cont [13/16] 0.0, 128
      %938 = vxpose.xlu0.b32.cont [14/16] 0.0, 128
      %939 = vxpose.xlu0.b32.cont [15/16] 0.0, 128
      %940 = vxpose.xlu0.b32.end [16/16] 0.0, 128
      %v941 = vpop.trf.xlu0
      %v942 = vpop.trf.xlu0
      %v943 = vpop.trf.xlu0
      %v944 = vpop.trf.xlu0
      %v945 = vpop.trf.xlu0
      %v946 = vpop.trf.xlu0
      %v947 = vpop.trf.xlu0
      %v948 = vpop.trf.xlu0
      %v949 = vpop.trf.xlu0
      %v950 = vpop.trf.xlu0
      %v951 = vpop.trf.xlu0
      %v952 = vpop.trf.xlu0
      %v953 = vpop.trf.xlu0
      %v954 = vpop.trf.xlu0
      %v955 = vpop.trf.xlu0
      %v956 = vpop.trf.xlu0
      %vm957 = vcmask 392192
      %958 = vst.msk [vmem:[%s140] sm:$0xff] %vm957, %v941
      %959 = vst.msk [vmem:[%s140 + $0x8] sm:$0xff] %vm957, %v942
      %960 = vst.msk [vmem:[%s140 + $0x10] sm:$0xff] %vm957, %v943
      %961 = vst.msk [vmem:[%s140 + $0x18] sm:$0xff] %vm957, %v944
      %962 = vst.msk [vmem:[%s140 + $0x20] sm:$0xff] %vm957, %v945
      %963 = vst.msk [vmem:[%s140 + $0x28] sm:$0xff] %vm957, %v946
      %964 = vst.msk [vmem:[%s140 + $0x30] sm:$0xff] %vm957, %v947
      %965 = vst.msk [vmem:[%s140 + $0x38] sm:$0xff] %vm957, %v948
      %966 = vst.msk [vmem:[%s140 + $0x40] sm:$0xff] %vm957, %v949
      %967 = vst.msk [vmem:[%s140 + $0x48] sm:$0xff] %vm957, %v950
      %968 = vst.msk [vmem:[%s140 + $0x50] sm:$0xff] %vm957, %v951
      %969 = vst.msk [vmem:[%s140 + $0x58] sm:$0xff] %vm957, %v952
      %970 = vst.msk [vmem:[%s140 + $0x60] sm:$0xff] %vm957, %v953
      %971 = vst.msk [vmem:[%s140 + $0x68] sm:$0xff] %vm957, %v954
      %972 = vst.msk [vmem:[%s140 + $0x70] sm:$0xff] %vm957, %v955
      %973 = vst.msk [vmem:[%s140 + $0x78] sm:$0xff] %vm957, %v956
      %s974 = smul.u32 16, %s13
      %p975 = scmp.lt.s32.totalorder %s974, 31
      %s976 = scalar_select %p975, %s974, 31
      %s977 = smul.addr %s976, 8
      %s978 = scalar_lea.vmem %s2, %s977
      // Predicated region
      $region29: #{tpu_custom_call.1} parent=27 // pred_check
        %p979 = pneg %p78
      $region30: #{tpu_custom_call.1} parent=27 // pred_check_branch
        %981 = sbr.rel (%p979) target = $region32
      $region31: #{tpu_custom_call.1} parent=27 // pred_region
        %s982 = smul.u32 16, %s13
      $region32: #{tpu_custom_call.1} parent=27 // pred_fallthru
        _
    $region28: #{tpu_custom_call.1} parent=5 // pred_fallthru
      _
    %p983 = scmp.le.s32.totalorder 2, %s8
    // Predicated region
    $region33: #{tpu_custom_call.1} parent=5 // pred_check
      %p984 = pneg %p983
    $region34: #{tpu_custom_call.1} parent=5 // pred_check_branch
      %986 = sbr.rel (%p984) target = $region36
    $region35: #{tpu_custom_call.1} parent=5 // pred_region
      %s987 = ssub.s32 %s8, 2
      // Predicated region
      $region37: #{tpu_custom_call.1} parent=35 // pred_check
        %p988 = pneg %p84
      $region38: #{tpu_custom_call.1} parent=35 // pred_check_branch
        %990 = sbr.rel (%p988) target = $region40
      $region39: #{tpu_custom_call.1} parent=35 // pred_region
        %s991 = smul.u32 16, %s14
        %p992 = scmp.lt.s32.totalorder %s991, 31
        %s993 = scalar_select %p992, %s991, 31
        %s994 = smul.addr %s993, 8
        %s995 = scalar_lea.vmem %s2, %s994
      $region40: #{tpu_custom_call.1} parent=35 // pred_fallthru
        _
    $region36: #{tpu_custom_call.1} parent=5 // pred_fallthru
      _
  $region6: #{tpu_custom_call.1} parent=0 // loop_footer
    %s12 = sadd.s32 1, %s8
  $region7: #{tpu_custom_call.1} parent=0 // loop_footer_branch
    %7 = sbr.rel target = $region3
  $region8: #{tpu_custom_call.1} parent=0 // loop_exit
    _

</llo_original>
